<compile_context>
chip_gen: v7x
topology: tpu7x:2x2x1
jax: 0.10.0
libtpu: 0.0.40
codegen_flags: <defaults>
</compile_context>

<pallas_src>
import functools

import jax
import jax.numpy as jnp
from jax.experimental import pallas as pl
from jax.experimental.pallas import tpu as pltpu


@functools.lru_cache(maxsize=None)
def _roll_sign():
    """+1 if pltpu.roll matches jnp.roll semantics (out[i] = in[i - shift]), else -1.

    Tiny one-off probe kernel so the main kernel's shift sign is always correct
    regardless of the primitive's rotation convention.
    """
    def probe(x_ref, o_ref):
        o_ref[...] = pltpu.roll(x_ref[...], shift=1, axis=1)

    x = jnp.arange(8 * 128, dtype=jnp.float32).reshape(8, 128)
    y = pl.pallas_call(probe, out_shape=jax.ShapeDtypeStruct((8, 128), jnp.float32))(x)
    return 1 if bool(jnp.array_equal(y, jnp.roll(x, 1, axis=1))) else -1


def bottleneck_kernel(x_ref, w1_ref, b1_ref, w2_ref, b2_ref, w3_ref, b3_ref,
                      o_ref, *, H, W, roll_sign):
    # x_ref/o_ref: (C, Mb) with Mb = images_per_step * H * W (lanes = flat n,h,w).
    Mb = x_ref.shape[1]

    x = x_ref[...]                                            # (Cin, Mb), 4 vregs here

    # ---- conv1 (1x1, bn1 folded) + bias + relu ----
    o1 = jnp.dot(w1_ref[...], x, preferred_element_type=jnp.float32)
    o1 = jnp.maximum(o1 + b1_ref[...], 0.0)                   # (Pp, Mb)

    # ---- conv2 (3x3, stride=1, pad=1, bn2 folded) as a single im2col dot ----
    # Per-lane (h, w) indices for zero-padding border masks.
    lane = jax.lax.broadcasted_iota(jnp.int32, (1, Mb), 1)
    pix = lane % (H * W)
    h_idx = pix // W
    w_idx = pix % W

    taps = []
    for kh in range(3):
        for kw in range(3):
            dh, dw = kh - 1, kw - 1
            off = dh * W + dw                                  # flat lane offset of this tap
            if off == 0:
                taps.append(o1)
                continue
            # rolled[:, l] == o1[:, l + off]; any wrapped lanes are masked below
            # (they coincide with h/w borders), so images never bleed into each other.
            rolled = pltpu.roll(o1, shift=(roll_sign * -off) % Mb, axis=1)
            valid = ((h_idx + dh >= 0) & (h_idx + dh < H) &
                     (w_idx + dw >= 0) & (w_idx + dw < W))
            taps.append(jnp.where(valid, rolled, 0.0))
    patch = jnp.concatenate(taps, axis=0)                      # (9*Pp, Mb), sublane concat

    o2 = jnp.dot(w2_ref[...], patch, preferred_element_type=jnp.float32)
    o2 = jnp.maximum(o2 + b2_ref[...], 0.0)                    # (Pp, Mb)

    # ---- conv3 (1x1, bn3 folded) + bias + residual add + relu ----
    o3 = jnp.dot(w3_ref[...], o2, preferred_element_type=jnp.float32)
    o_ref[...] = jnp.maximum(o3 + b3_ref[...] + x, 0.0)


def bottleneck_forward(x_nchw, kparams, images_per_step=1):
    """x_nchw: (N, Cin, H, W) float32. kparams: BN-folded, im2col-packed params."""
    w1f, b1f, w2f, b2f, w3f, b3f = kparams
    N, Cin, H, W = x_nchw.shape
    Cout = w3f.shape[0]
    assert Cin == Cout, "downsample=None requires inplanes == planes*4"
    nb = images_per_step
    assert N % nb == 0
    Mb = nb * H * W
    assert Mb % 128 == 0, "per-step lane width must be a multiple of 128"
    M = N * H * W

    # NCHW -> (C, N*H*W): channels on sublanes, flat (n, h, w) on lanes.
    x_cm = jnp.transpose(x_nchw, (1, 0, 2, 3)).reshape(Cin, M)

    kernel = functools.partial(bottleneck_kernel, H=H, W=W, roll_sign=_roll_sign())

    out_cm = pl.pallas_call(
        kernel,
        out_shape=jax.ShapeDtypeStruct((Cout, M), jnp.float32),
        grid_spec=pltpu.PrefetchScalarGridSpec(
            num_scalar_prefetch=0,
            grid=(N // nb,),                                   # >= 2 steps by default
            in_specs=[
                pl.BlockSpec((Cin, Mb), lambda n: (0, n)),     # x block (lane-dense)
                pl.BlockSpec(w1f.shape, lambda n: (0, 0)),     # w1 (folded)
                pl.BlockSpec(b1f.shape, lambda n: (0, 0)),     # b1
                pl.BlockSpec(w2f.shape, lambda n: (0, 0)),     # w2 (im2col, folded)
                pl.BlockSpec(b2f.shape, lambda n: (0, 0)),     # b2
                pl.BlockSpec(w3f.shape, lambda n: (0, 0)),     # w3 (folded)
                pl.BlockSpec(b3f.shape, lambda n: (0, 0)),     # b3
            ],
            out_specs=pl.BlockSpec((Cout, Mb), lambda n: (0, n)),
        ),
        compiler_params=pltpu.CompilerParams(
            dimension_semantics=("parallel",),   # independent image blocks (2 TCs on v7x)
        ),
    )(x_cm, w1f, b1f, w2f, b2f, w3f, b3f)

    out = out_cm.reshape(Cout, N, H, W)
    return jnp.transpose(out, (1, 0, 2, 3))                    # -> NCHW


def fold_bn(gamma, beta, mean, var, eps=1e-5):
    scale = gamma / jnp.sqrt(var + eps)
    bias = beta - mean * scale
    return scale, bias


def make_raw_params(key, inplanes, planes):
    """Deterministic synthetic conv weights + inference-mode BN running stats."""
    cout = planes * 4
    ks = jax.random.split(key, 6)
    w1 = 0.1 * jax.random.normal(ks[0], (inplanes, planes), jnp.float32)      # 1x1 (Cin, P)
    w2 = 0.1 * jax.random.normal(ks[1], (3, 3, planes, planes), jnp.float32)  # HWIO
    w3 = 0.1 * jax.random.normal(ks[2], (planes, cout), jnp.float32)          # 1x1 (P, Cout)

    def bn(k, c):
        k1, k2, k3, k4 = jax.random.split(k, 4)
        gamma = 1.0 + 0.1 * jax.random.normal(k1, (c,), jnp.float32)
        beta = 0.1 * jax.random.normal(k2, (c,), jnp.float32)
        mean = 0.1 * jax.random.normal(k3, (c,), jnp.float32)
        var = 1.0 + 0.1 * jax.random.uniform(k4, (c,), jnp.float32)
        return gamma, beta, mean, var

    return (w1, bn(ks[3], planes), w2, bn(ks[4], planes), w3, bn(ks[5], cout))


def prepare_kernel_params(raw, sublane=8):
    """Fold BN into conv weights, transpose to (out, in) layout, pack conv2 for im2col."""
    w1, bn1, w2, bn2, w3, bn3 = raw
    cin, p = w1.shape
    cout = w3.shape[1]
    assert cin == cout, "downsample=None requires inplanes == planes*4"
    pp = sublane * pl.cdiv(p, sublane)          # planes padded to a sublane multiple only

    s1, b1 = fold_bn(*bn1)
    s2, b2 = fold_bn(*bn2)
    s3, b3 = fold_bn(*bn3)

    # conv1: (Pp, Cin);  [po, c] = w1[c, po] * s1[po]
    w1f = jnp.zeros((pp, cin), jnp.float32).at[:p, :].set((w1 * s1[None, :]).T)
    b1f = jnp.zeros((pp, 1), jnp.float32).at[:p, 0].set(b1)

    # conv2 im2col: (Pp, 9*Pp);  [po, t*pp + pi] = w2[kh, kw, pi, po] * s2[po], t = kh*3+kw
    w2s = w2 * s2[None, None, None, :]
    w2f = jnp.zeros((pp, 9 * pp), jnp.float32)
    for kh in range(3):
        for kw in range(3):
            t = kh * 3 + kw
            w2f = w2f.at[:p, t * pp:t * pp + p].set(w2s[kh, kw].T)
    b2f = jnp.zeros((pp, 1), jnp.float32).at[:p, 0].set(b2)

    # conv3: (Cout, Pp);  [co, pi] = w3[pi, co] * s3[co]
    w3f = jnp.zeros((cout, pp), jnp.float32).at[:, :p].set((w3 * s3[None, :]).T)
    b3f = b3.reshape(cout, 1)
    return (w1f, b1f, w2f, b2f, w3f, b3f)


def reference_forward(x_nchw, raw):
    """Pure-JAX reference (lax.conv, NHWC) with the same inference-mode BN fold."""
    w1, bn1, w2, bn2, w3, bn3 = raw
    s1, b1 = fold_bn(*bn1)
    s2, b2 = fold_bn(*bn2)
    s3, b3 = fold_bn(*bn3)
    cin, p = w1.shape
    cout = w3.shape[1]

    x = jnp.transpose(x_nchw, (0, 2, 3, 1))
    dn = ('NHWC', 'HWIO', 'NHWC')

    def conv(v, w, pad):
        return jax.lax.conv_general_dilated(v, w, (1, 1), pad, dimension_numbers=dn)

    o = conv(x, (w1 * s1[None, :]).reshape(1, 1, cin, p), 'VALID')
    o = jnp.maximum(o + b1, 0.0)
    o = conv(o, w2 * s2[None, None, None, :], 'SAME')
    o = jnp.maximum(o + b2, 0.0)
    o = conv(o, (w3 * s3[None, :]).reshape(1, 1, p, cout), 'VALID')
    o = jnp.maximum(o + b3 + x, 0.0)
    return jnp.transpose(o, (0, 3, 1, 2))


if __name__ == "__main__":
    key = jax.random.PRNGKey(0)
    kx, kp = jax.random.split(key)

    N, planes, H, W = 2, 4, 16, 16
    inplanes = planes * 4                       # required by downsample=None
    x = jax.random.normal(kx, (N, inplanes, H, W), jnp.float32)

    raw = make_raw_params(kp, inplanes, planes)
    kparams = prepare_kernel_params(raw)

    out = jax.block_until_ready(bottleneck_forward(x, kparams))
    ref = reference_forward(x, raw)

    assert out.shape == (N, inplanes, H, W)
    err = float(jnp.max(jnp.abs(out - ref)))
    assert jnp.allclose(out, ref, atol=1e-3, rtol=1e-3), f"max err {err}"
    print("KERNEL_OK")
</pallas_src>

<mosaic_0001>
module attributes {stable_mosaic.version = 11 : i64} {
  func.func @probe(%arg0: memref<8x128xf32, #tpu.memory_space<vmem>>, %arg1: memref<8x128xf32, #tpu.memory_space<vmem>>) attributes {dimension_semantics = [], scalar_prefetch = 0 : i64, scratch_operands = 0 : i64, tpu.core_type = #tpu.core_type<tc>} {
    %c0 = arith.constant 0 : index
    %c0_0 = arith.constant 0 : index
    %0 = vector.load %arg0[%c0, %c0_0] : memref<8x128xf32, #tpu.memory_space<vmem>>, vector<8x128xf32>
    %c1_i32 = arith.constant 1 : i32
    %1 = tpu.dynamic_rotate %0 by %c1_i32 dim 1 : vector<8x128xf32>, i32 -> vector<8x128xf32>
    %c0_1 = arith.constant 0 : index
    %c0_2 = arith.constant 0 : index
    %2 = vector.load %arg1[%c0_1, %c0_2] : memref<8x128xf32, #tpu.memory_space<vmem>>, vector<8x128xf32>
    tpu.vector_store %arg1[%c0_1, %c0_2], %1 {strides = array<i32>} : memref<8x128xf32, #tpu.memory_space<vmem>>, vector<8x128xf32>,
    return
  }
}

</mosaic_0001>

<llo_original>
// kernel: tpu_custom_call.1
$region0: #{tpu_custom_call.1}
  #allocation0 [shape = 'u32[]', space=smem, size = 0x4, offset = 0x4, fixed_abs, tag = 'smem constant byte address 0x4 - core index']
  #allocation1 [shape = 'u32[144,128]{1,0:T(1,128)}', space=vmem, size = 0x12000, scoped, tag = 'internal scratch']
  %s0 = inlined_call_operand.hbm [shape: f32[8,128], index: 0, kind: input, shape index: {}]
  %s1 = inlined_call_operand.hbm [shape: f32[8,128], index: 1, kind: output, shape index: {}]
  %s2 = sld [smem:[#allocation0]]
  $region18: #{tpu_custom_call.1} parent=0
    _
  %s4 = ssub.s32 1, %s2
  %s5 = scalar_select 0, %s4, %s2
  $region1: #{tpu_custom_call.1} parent=0
    #allocation2 [shape = 'u8[4096]{0}', space=vmem, size = 0x1000, scoped, tag = 'input window, operand 0, single buffered']
    #allocation3 [shape = 's32[1]{0}', space=sflag, size = 0x4, scoped, tag = 'scoped memory for tpu_custom_call.1']
    #allocation4 [shape = 's32[1]{0}', space=sflag, size = 0x4, scoped, tag = 'scoped memory for tpu_custom_call.1']
    #allocation5 [shape = 'u8[4096]{0}', space=vmem, size = 0x1000, scoped, tag = 'output window, operand 0, single buffered']
    %6 = vsyncpa [#allocation3], 0
    %7 = vsyncpa [#allocation4], 0
    // Predicated region
    $region2: #{tpu_custom_call.1} parent=1 // pred_check
      _
    $region3: #{tpu_custom_call.1} parent=1 // pred_check_branch
      %9 = sbr.rel (0) target = $region5
    $region4: #{tpu_custom_call.1} parent=1 // pred_region
      %s11 = ssub.s32 128, 128
      %12 = vsyncadd [#allocation3], %s11
      %s14 = sshll.u32 [#allocation2], 4
      %s15 = int_to_ptr.vmem [resolvable:$true] %s14
      %17 = dma.hbm_to_vmem [thread:$0]  %s0, 128, %s15, [#allocation3]
    $region5: #{tpu_custom_call.1} parent=1 // pred_fallthru
      _
    // Predicated region
    $region6: #{tpu_custom_call.1} parent=1 // pred_check
      _
    $region7: #{tpu_custom_call.1} parent=1 // pred_check_branch
      %19 = sbr.rel (0) target = $region9
    $region8: #{tpu_custom_call.1} parent=1 // pred_region
      %20 = dma.done [#allocation3], 128
    $region9: #{tpu_custom_call.1} parent=1 // pred_fallthru
      _
    %v21 = vld [vmem:[#allocation2] sm:$0xff]
    %22 = vrot.lane.b32.xlu0 %v21, 1
    %v23 = vpop.permute.xlu0 %22
    %24 = vst [vmem:[#allocation5] sm:$0xff] %v23
    // Predicated region
    $region10: #{tpu_custom_call.1} parent=1 // pred_check
      _
    $region11: #{tpu_custom_call.1} parent=1 // pred_check_branch
      %26 = sbr.rel (0) target = $region13
    $region12: #{tpu_custom_call.1} parent=1 // pred_region
      %s28 = ssub.s32 128, 128
      %29 = vsyncadd [#allocation4], %s28
      %s31 = sshll.u32 [#allocation5], 4
      %s32 = int_to_ptr.vmem [resolvable:$true] %s31
      %34 = dma.vmem_to_hbm [thread:$0]  %s32, 128, %s1, [#allocation4]
    $region13: #{tpu_custom_call.1} parent=1 // pred_fallthru
      _
    // Predicated region
    $region14: #{tpu_custom_call.1} parent=1 // pred_check
      _
    $region15: #{tpu_custom_call.1} parent=1 // pred_check_branch
      %36 = sbr.rel (0) target = $region17
    $region16: #{tpu_custom_call.1} parent=1 // pred_region
      %37 = dma.done [#allocation4], 128
    $region17: #{tpu_custom_call.1} parent=1 // pred_fallthru
      _
    %38 = vsyncpa [#allocation3], 1
    %39 = vsyncpa [#allocation4], 1

</llo_original>
